<compile_context>
chip_gen: v7x
topology: tpu7x:2x2x1
jax: 0.10.0
libtpu: 0.0.40
codegen_flags: <defaults>
</compile_context>

<pallas_src>
import functools
import math

import jax
import jax.numpy as jnp
from jax.experimental import pallas as pl
from jax.experimental.pallas import tpu as pltpu

_RESIDENT_SUPPORT_BYTES = 8 * 1024 * 1024  # keep support VMEM-resident below this


def _round_up(x, m):
    return ((x + m - 1) // m) * m


def _snap128(x):
    """Round a tile target down to a multiple of 128 (min 128)."""
    return max(128, (int(x) // 128) * 128)


def _pick_tile(n, target):
    """Largest multiple of 128 that divides n and is <= target.

    Requires n % 128 == 0 and target % 128 == 0.
    """
    assert n % 128 == 0 and target % 128 == 0
    t = min(target, n)
    while n % t:
        t -= 128
    return t


def _tiling(n_nodes, out_feat, row_tile, k_tile):
    """Pick (n_pad, tm, tk, f_pad) so tiles never degrade below the targets."""
    row_tile = _snap128(row_tile)
    k_tile = _snap128(k_tile)
    f_pad = _round_up(out_feat, 128)
    n128 = _round_up(n_nodes, 128)
    tm = min(row_tile, n128)
    # Pad the node axis up to a multiple of the row tile (a few extra zero rows
    # of adj are far cheaper than running the whole reduction at 128-granularity).
    n_pad = _round_up(n_nodes, tm)
    # Give the "parallel" i axis at least 2 tiles when cheap (v7x has 2 TCs).
    if n_pad == tm and tm % 256 == 0:
        tm //= 2
    tk = _pick_tile(n_pad, k_tile)
    return n_pad, tm, tk, f_pad


def _vmem_limit_bytes():
    """~3/4 of physical VMEM, capped at 96 MiB (=> ~48 MiB on v7x, 96 MiB on v5e/v6e)."""
    try:
        cap = int(pltpu.get_tpu_info().vmem_capacity_bytes)
    except Exception:
        cap = 64 * 1024 * 1024
    return int(min(cap * 3 // 4, 96 * 1024 * 1024))


def prepare_adjacency(adj, *, compute_dtype=jnp.bfloat16, row_tile=512, k_tile=1024):
    """Pad + cast adj once per graph; pass the result to every GCN layer call.

    This hoists the O(N^2) copy/cast out of the per-call path (adj is constant
    across layers and epochs).
    """
    n = adj.shape[0]
    n_pad, _, _, _ = _tiling(n, 1, row_tile, k_tile)
    if n_pad == n:
        return adj.astype(compute_dtype)
    return jnp.zeros((n_pad, n_pad), compute_dtype).at[:n, :n].set(
        adj.astype(compute_dtype))


# ---------------------------------------------------------------------------
# Stage 1: feature transform  support = X @ W,  skip = X @ W_skip
# (two separate dots: same MXU work, half the f32 live range of a fused dot)
# ---------------------------------------------------------------------------
def _feature_transform_kernel(x_ref, w_ref, ws_ref, sup_ref, skip_ref):
    x = x_ref[...]
    sup_ref[...] = jnp.dot(x, w_ref[...],
                           preferred_element_type=jnp.float32).astype(sup_ref.dtype)
    skip_ref[...] = jnp.dot(x, ws_ref[...],
                            preferred_element_type=jnp.float32).astype(skip_ref.dtype)


# ---------------------------------------------------------------------------
# Stage 2: adjacency aggregation  out = adj @ support + bias + skip
# ---------------------------------------------------------------------------
def _adj_agg_kernel(adj_ref, sup_ref, skip_ref, b_ref, o_ref, acc_ref, *,
                    tk, resident):
    k = pl.program_id(1)

    @pl.when(k == 0)
    def _():
        acc_ref[...] = jnp.zeros_like(acc_ref)

    if resident:
        # support is fully VMEM-resident; slice the k-th reduction chunk.
        koff = pl.multiple_of(k * tk, 128)
        sup = sup_ref[pl.ds(koff, tk), :]
    else:
        sup = sup_ref[...]

    acc_ref[...] += jnp.dot(adj_ref[...], sup, preferred_element_type=jnp.float32)

    @pl.when(k == pl.num_programs(1) - 1)
    def _():
        o_ref[...] = (acc_ref[...] + b_ref[...]
                      + skip_ref[...].astype(jnp.float32)).astype(o_ref.dtype)


def graph_convolution_skip(x, adj, weight, weight_skip, bias=None, *,
                           compute_dtype=jnp.bfloat16,
                           row_tile=512, k_tile=1024):
    """Pallas forward pass of GraphConvolutionSkip.

    x:           [num_nodes, in_features]
    adj:         [num_nodes, num_nodes] normalized dense adjacency, OR the
                 pre-padded/cast output of prepare_adjacency() (recommended
                 when calling several layers on the same graph).
    weight:      [in_features, out_features]
    weight_skip: [in_features, out_features]
    bias:        [out_features] or None
    returns:     [num_nodes, out_features] float32
    """
    n_nodes, in_feat = x.shape
    out_feat = weight.shape[1]

    n_pad, tm, tk, f_pad = _tiling(n_nodes, out_feat, row_tile, k_tile)
    tr = tm  # row tile for the feature transform (divides n_pad)
    vmem_limit = _vmem_limit_bytes()
    itemsize = jnp.dtype(compute_dtype).itemsize

    # ---- wrapper-side padding / casting --------------------------------------
    x_p = jnp.zeros((n_pad, in_feat), compute_dtype).at[:n_nodes, :].set(
        x.astype(compute_dtype))
    w_p = jnp.zeros((in_feat, f_pad), compute_dtype).at[:, :out_feat].set(
        weight.astype(compute_dtype))
    ws_p = jnp.zeros((in_feat, f_pad), compute_dtype).at[:, :out_feat].set(
        weight_skip.astype(compute_dtype))
    b_p = jnp.zeros((1, f_pad), jnp.float32)
    if bias is not None:
        b_p = b_p.at[0, :out_feat].set(bias.astype(jnp.float32))

    # adj: skip the O(N^2) pad/cast when the caller already did it (per graph).
    if adj.shape[0] == n_pad and adj.shape[1] == n_pad:
        adj_p = adj if adj.dtype == compute_dtype else adj.astype(compute_dtype)
    elif adj.shape == (n_nodes, n_nodes):
        if n_pad == n_nodes:
            adj_p = adj.astype(compute_dtype)
        else:
            adj_p = jnp.zeros((n_pad, n_pad), compute_dtype).at[
                :n_nodes, :n_nodes].set(adj.astype(compute_dtype))
    else:
        raise ValueError(f"adj shape {adj.shape} incompatible with "
                         f"{n_nodes} nodes (padded {n_pad})")

    # ---- stage 1: support = X @ W, skip = X @ W_skip -------------------------
    support, skip = pl.pallas_call(
        _feature_transform_kernel,
        out_shape=(jax.ShapeDtypeStruct((n_pad, f_pad), compute_dtype),
                   jax.ShapeDtypeStruct((n_pad, f_pad), compute_dtype)),
        grid_spec=pltpu.PrefetchScalarGridSpec(
            num_scalar_prefetch=0,
            grid=(n_pad // tr,),
            in_specs=[pl.BlockSpec((tr, in_feat), lambda r: (r, 0)),
                      pl.BlockSpec((in_feat, f_pad), lambda r: (0, 0)),
                      pl.BlockSpec((in_feat, f_pad), lambda r: (0, 0))],
            out_specs=[pl.BlockSpec((tr, f_pad), lambda r: (r, 0)),
                       pl.BlockSpec((tr, f_pad), lambda r: (r, 0))]),
        compiler_params=pltpu.CompilerParams(
            dimension_semantics=("parallel",),
            vmem_limit_bytes=vmem_limit),
    )(x_p, w_p, ws_p)

    # ---- stage 2: out = adj @ support + bias + skip --------------------------
    resident = (n_pad * f_pad * itemsize) <= _RESIDENT_SUPPORT_BYTES
    if resident:
        sup_spec = pl.BlockSpec((n_pad, f_pad), lambda i, k: (0, 0))
    else:
        sup_spec = pl.BlockSpec((tk, f_pad), lambda i, k: (k, 0))

    kernel = functools.partial(_adj_agg_kernel, tk=tk, resident=resident)

    flops = 2 * n_pad * n_pad * f_pad
    sup_reads = 1 if resident else (n_pad // tm)
    bytes_accessed = (adj_p.size * adj_p.dtype.itemsize
                      + support.size * support.dtype.itemsize * sup_reads
                      + skip.size * skip.dtype.itemsize
                      + b_p.size * 4
                      + n_pad * f_pad * 4)

    out_p = pl.pallas_call(
        kernel,
        out_shape=jax.ShapeDtypeStruct((n_pad, f_pad), jnp.float32),
        grid_spec=pltpu.PrefetchScalarGridSpec(
            num_scalar_prefetch=0,
            grid=(n_pad // tm, n_pad // tk),
            in_specs=[pl.BlockSpec((tm, tk), lambda i, k: (i, k)),      # adj (streamed)
                      sup_spec,                                          # support
                      pl.BlockSpec((tm, f_pad), lambda i, k: (i, 0)),    # skip
                      pl.BlockSpec((1, f_pad), lambda i, k: (0, 0))],    # bias
            out_specs=pl.BlockSpec((tm, f_pad), lambda i, k: (i, 0)),
            scratch_shapes=[pltpu.VMEM((tm, f_pad), jnp.float32)]),
        compiler_params=pltpu.CompilerParams(
            dimension_semantics=("parallel", "arbitrary"),
            vmem_limit_bytes=vmem_limit),
        cost_estimate=pl.CostEstimate(
            flops=int(flops), transcendentals=0,
            bytes_accessed=int(bytes_accessed)),
    )(adj_p, support, skip, b_p)

    return out_p[:n_nodes, :out_feat]


def _reference(x, adj, w, ws, b):
    return adj @ (x @ w) + b + x @ ws


def _make_inputs(key, num_nodes, in_features, out_features):
    kx, ka, kw, kws, kb = jax.random.split(key, 5)
    x = jax.random.normal(kx, (num_nodes, in_features), dtype=jnp.float32)

    # Symmetric-normalized adjacency: (D+I)^(-1/2)(A+I)(D+I)^(-1/2)
    a_raw = (jax.random.uniform(ka, (num_nodes, num_nodes)) > 0.7).astype(jnp.float32)
    a_sym = jnp.maximum(a_raw, a_raw.T)
    a_hat = a_sym + jnp.eye(num_nodes, dtype=jnp.float32)
    d_inv_sqrt = 1.0 / jnp.sqrt(a_hat.sum(axis=1))
    adj = d_inv_sqrt[:, None] * a_hat * d_inv_sqrt[None, :]

    # Mirror reset_parameters(): weight ~ U(0, stdv), bias ~ U(-stdv, stdv),
    # weightSkip ~ U(0, stdv); stdv = 1/sqrt(out_features)
    stdv = 1.0 / math.sqrt(out_features)
    weight = jax.random.uniform(kw, (in_features, out_features),
                                minval=0.0, maxval=stdv, dtype=jnp.float32)
    weight_skip = jax.random.uniform(kws, (in_features, out_features),
                                     minval=0.0, maxval=stdv, dtype=jnp.float32)
    bias = jax.random.uniform(kb, (out_features,),
                              minval=-stdv, maxval=stdv, dtype=jnp.float32)
    return x, adj, weight, weight_skip, bias


if __name__ == "__main__":
    key = jax.random.PRNGKey(0)
    k1, k2 = jax.random.split(key)

    # --- test 1: small, module-consistent shapes (16 nodes, 8 -> 32 features) ---
    x, adj, w, ws, b = _make_inputs(k1, num_nodes=16, in_features=8, out_features=32)
    ref = _reference(x, adj, w, ws, b)

    out = jax.block_until_ready(graph_convolution_skip(x, adj, w, ws, b))
    assert out.shape == (16, 32)
    # bf16 operands + f32 accumulation: loosened tolerance vs the f32 reference.
    assert jnp.allclose(out, ref, atol=5e-2, rtol=5e-2), "bf16 path mismatch"

    out_f32 = jax.block_until_ready(
        graph_convolution_skip(x, adj, w, ws, b, compute_dtype=jnp.float32))
    assert jnp.allclose(out_f32, ref, atol=1e-5, rtol=1e-5), "f32 path mismatch"

    # --- test 2: unaligned shapes + hoisted (pre-padded/cast) adjacency ---------
    x2, adj2, w2, ws2, b2 = _make_inputs(k2, num_nodes=200, in_features=37,
                                         out_features=70)
    ref2 = _reference(x2, adj2, w2, ws2, b2)
    adj2_prepped = prepare_adjacency(adj2)  # per-graph hoist of the O(N^2) pad/cast
    out2 = jax.block_until_ready(
        graph_convolution_skip(x2, adj2_prepped, w2, ws2, b2))
    assert out2.shape == (200, 70)
    assert jnp.allclose(out2, ref2, atol=5e-2, rtol=5e-2), "padded-path mismatch"

    print("KERNEL_OK")
</pallas_src>

<mosaic_0001>
module attributes {stable_mosaic.version = 11 : i64} {
  func.func @_feature_transform_kernel(%arg0: i32, %arg1: memref<128x8xbf16, #tpu.memory_space<vmem>>, %arg2: memref<8x128xbf16, #tpu.memory_space<vmem>>, %arg3: memref<8x128xbf16, #tpu.memory_space<vmem>>, %arg4: memref<128x128xbf16, #tpu.memory_space<vmem>>, %arg5: memref<128x128xbf16, #tpu.memory_space<vmem>>) attributes {dimension_semantics = [#tpu.dimension_semantics<parallel>], iteration_bounds = array<i64: 1>, scalar_prefetch = 0 : i64, scratch_operands = 0 : i64, tpu.core_type = #tpu.core_type<tc>, window_params = [{transform_indices = @transform_0, window_bounds = array<i64: 128, 8>}, {pipeline_mode = #tpu.pipeline_mode<synchronous>, transform_indices = @transform_1, window_bounds = array<i64: 8, 128>}, {pipeline_mode = #tpu.pipeline_mode<synchronous>, transform_indices = @transform_2, window_bounds = array<i64: 8, 128>}, {transform_indices = @transform_3, window_bounds = array<i64: 128, 128>}, {transform_indices = @transform_4, window_bounds = array<i64: 128, 128>}]} {
    %c0 = arith.constant 0 : index
    %c0_0 = arith.constant 0 : index
    %0 = vector.load %arg1[%c0, %c0_0] : memref<128x8xbf16, #tpu.memory_space<vmem>>, vector<128x8xbf16>
    %c0_1 = arith.constant 0 : index
    %c0_2 = arith.constant 0 : index
    %1 = vector.load %arg2[%c0_1, %c0_2] : memref<8x128xbf16, #tpu.memory_space<vmem>>, vector<8x128xbf16>
    %cst = arith.constant dense<0.000000e+00> : vector<128x128xf32>
    %2 = tpu.matmul %0, %1, %cst {dimension_numbers = #tpu.dot_dimension_numbers<[1], [0], [0], [1], [0, 0, 1, 1], [], []>} : vector<128x8xbf16>, vector<8x128xbf16>, vector<128x128xf32> -> vector<128x128xf32>
    %3 = arith.truncf %2 : vector<128x128xf32> to vector<128x128xbf16>
    %c0_3 = arith.constant 0 : index
    %c0_4 = arith.constant 0 : index
    %4 = vector.load %arg4[%c0_3, %c0_4] : memref<128x128xbf16, #tpu.memory_space<vmem>>, vector<128x128xbf16>
    tpu.vector_store %arg4[%c0_3, %c0_4], %3 {strides = array<i32>} : memref<128x128xbf16, #tpu.memory_space<vmem>>, vector<128x128xbf16>,
    %c0_5 = arith.constant 0 : index
    %c0_6 = arith.constant 0 : index
    %5 = vector.load %arg3[%c0_5, %c0_6] : memref<8x128xbf16, #tpu.memory_space<vmem>>, vector<8x128xbf16>
    %cst_7 = arith.constant dense<0.000000e+00> : vector<128x128xf32>
    %6 = tpu.matmul %0, %5, %cst_7 {dimension_numbers = #tpu.dot_dimension_numbers<[1], [0], [0], [1], [0, 0, 1, 1], [], []>} : vector<128x8xbf16>, vector<8x128xbf16>, vector<128x128xf32> -> vector<128x128xf32>
    %7 = arith.truncf %6 : vector<128x128xf32> to vector<128x128xbf16>
    %c0_8 = arith.constant 0 : index
    %c0_9 = arith.constant 0 : index
    %8 = vector.load %arg5[%c0_8, %c0_9] : memref<128x128xbf16, #tpu.memory_space<vmem>>, vector<128x128xbf16>
    tpu.vector_store %arg5[%c0_8, %c0_9], %7 {strides = array<i32>} : memref<128x128xbf16, #tpu.memory_space<vmem>>, vector<128x128xbf16>,
    return
  }
  func.func @transform_0(%arg0: i32) -> (i32, i32) {
    %c0_i32 = arith.constant 0 : i32
    %c0_i32_0 = arith.constant 0 : i32
    return %arg0, %c0_i32 : i32, i32
  }
  func.func @transform_1(%arg0: i32) -> (i32, i32) {
    %c0_i32 = arith.constant 0 : i32
    %c0_i32_0 = arith.constant 0 : i32
    %c0_i32_1 = arith.constant 0 : i32
    return %c0_i32, %c0_i32_0 : i32, i32
  }
  func.func @transform_2(%arg0: i32) -> (i32, i32) {
    %c0_i32 = arith.constant 0 : i32
    %c0_i32_0 = arith.constant 0 : i32
    %c0_i32_1 = arith.constant 0 : i32
    return %c0_i32, %c0_i32_0 : i32, i32
  }
  func.func @transform_3(%arg0: i32) -> (i32, i32) {
    %c0_i32 = arith.constant 0 : i32
    %c0_i32_0 = arith.constant 0 : i32
    return %arg0, %c0_i32 : i32, i32
  }
  func.func @transform_4(%arg0: i32) -> (i32, i32) {
    %c0_i32 = arith.constant 0 : i32
    %c0_i32_0 = arith.constant 0 : i32
    return %arg0, %c0_i32 : i32, i32
  }
}

</mosaic_0001>

<llo_original>
// kernel: tpu_custom_call.1
$region0: #{tpu_custom_call.1}
  #allocation0 [shape = 'u32[]', space=smem, size = 0x4, offset = 0x4, fixed_abs, tag = 'smem constant byte address 0x4 - core index']
  #allocation1 [shape = 'u32[144,128]{1,0:T(1,128)}', space=vmem, size = 0x12000, scoped, tag = 'internal scratch']
  %s0 = inlined_call_operand.vmem [shape: bf16[128,8], index: 0, kind: input, shape index: {}]
  %s1 = inlined_call_operand.vmem [shape: bf16[8,128], index: 1, kind: input, shape index: {}]
  %s2 = inlined_call_operand.vmem [shape: bf16[8,128], index: 2, kind: input, shape index: {}]
  %s3 = inlined_call_operand.hbm [shape: bf16[128,128], index: 3, kind: output, shape index: {0}]
  %s4 = inlined_call_operand.hbm [shape: bf16[128,128], index: 4, kind: output, shape index: {1}]
  %5 = xla_tuple %s3, %s4
  %s6 = sld [smem:[#allocation0]]
  $region30: #{tpu_custom_call.1} parent=0
    _
  %s8 = ssub.s32 1, %s6
  %s9 = scalar_select 0, %s8, %s6
  $region1: #{tpu_custom_call.1} parent=0
    #allocation2 [shape = 'u8[32768]{0}', space=vmem, size = 0x8000, scoped, tag = 'output window, operand 0, single buffered']
    #allocation3 [shape = 's32[1]{0}', space=sflag, size = 0x4, scoped, tag = 'scoped memory for tpu_custom_call.1']
    #allocation4 [shape = 'u8[32768]{0}', space=vmem, size = 0x8000, scoped, tag = 'output window, operand 1, single buffered']
    #allocation5 [shape = 's32[1]{0}', space=sflag, size = 0x4, scoped, tag = 'scoped memory for tpu_custom_call.1']
    %10 = vsyncpa [#allocation3], 0
    %11 = vsyncpa [#allocation5], 0
    // Predicated region
    $region2: #{tpu_custom_call.1} parent=1 // pred_check
      _
    $region3: #{tpu_custom_call.1} parent=1 // pred_check_branch
      %13 = sbr.rel (0) target = $region5
    $region4: #{tpu_custom_call.1} parent=1 // pred_region
      _
    $region5: #{tpu_custom_call.1} parent=1 // pred_fallthru
      _
    // Predicated region
    $region6: #{tpu_custom_call.1} parent=1 // pred_check
      _
    $region7: #{tpu_custom_call.1} parent=1 // pred_check_branch
      %15 = sbr.rel (0) target = $region9
    $region8: #{tpu_custom_call.1} parent=1 // pred_region
      _
    $region9: #{tpu_custom_call.1} parent=1 // pred_fallthru
      _
    // Predicated region
    $region10: #{tpu_custom_call.1} parent=1 // pred_check
      _
    $region11: #{tpu_custom_call.1} parent=1 // pred_check_branch
      %17 = sbr.rel (0) target = $region13
    $region12: #{tpu_custom_call.1} parent=1 // pred_region
      _
    $region13: #{tpu_custom_call.1} parent=1 // pred_fallthru
      _
    %v19 = vld [vmem:[%s0] sm:$0xf]
    %v20 = vld [vmem:[%s0 + $0x4] sm:$0xf]
    %v21 = vld [vmem:[%s0 + $0x8] sm:$0xf]
    %v22 = vld [vmem:[%s0 + $0xc] sm:$0xf]
    %v23 = vld [vmem:[%s0 + $0x10] sm:$0xf]
    %v24 = vld [vmem:[%s0 + $0x14] sm:$0xf]
    %v25 = vld [vmem:[%s0 + $0x18] sm:$0xf]
    %v26 = vld [vmem:[%s0 + $0x1c] sm:$0xf]
    %v27 = vld [vmem:[%s0 + $0x20] sm:$0xf]
    %v28 = vld [vmem:[%s0 + $0x24] sm:$0xf]
    %v29 = vld [vmem:[%s0 + $0x28] sm:$0xf]
    %v30 = vld [vmem:[%s0 + $0x2c] sm:$0xf]
    %v31 = vld [vmem:[%s0 + $0x30] sm:$0xf]
    %v32 = vld [vmem:[%s0 + $0x34] sm:$0xf]
    %v33 = vld [vmem:[%s0 + $0x38] sm:$0xf]
    %v34 = vld [vmem:[%s0 + $0x3c] sm:$0xf]
    %v35 = vld [vmem:[%s1] sm:$0xf]
    %v52 = vunpack.c.l.b16 %v19
    %v53 = vunpack.c.l.b16 %v20
    %v54 = vunpack.c.l.b16 %v21
    %v55 = vunpack.c.l.b16 %v22
    %v56 = vunpack.c.l.b16 %v23
    %v57 = vunpack.c.l.b16 %v24
    %v58 = vunpack.c.l.b16 %v25
    %v59 = vunpack.c.l.b16 %v26
    %v60 = vunpack.c.l.b16 %v27
    %v61 = vunpack.c.l.b16 %v28
    %v62 = vunpack.c.l.b16 %v29
    %v63 = vunpack.c.l.b16 %v30
    %v64 = vunpack.c.l.b16 %v31
    %v65 = vunpack.c.l.b16 %v32
    %v66 = vunpack.c.l.b16 %v33
    %v67 = vunpack.c.l.b16 %v34
    %v68 = vpack.c.b16 %v53, %v52
    %v69 = vpack.c.b16 %v55, %v54
    %v70 = vpack.c.b16 %v57, %v56
    %v71 = vpack.c.b16 %v59, %v58
    %v72 = vpack.c.b16 %v61, %v60
    %v73 = vpack.c.b16 %v63, %v62
    %v74 = vpack.c.b16 %v65, %v64
    %v75 = vpack.c.b16 %v67, %v66
    %vm76 = vcmask 64512
    %v78 = vsel %vm76, %v68, 0
    %v81 = vsel %vm76, %v69, 0
    %v84 = vsel %vm76, %v70, 0
    %v87 = vsel %vm76, %v71, 0
    %v90 = vsel %vm76, %v72, 0
    %v93 = vsel %vm76, %v73, 0
    %v96 = vsel %vm76, %v74, 0
    %v99 = vsel %vm76, %v75, 0
    %vm101 = vcmask 1043456
    %v103 = vsel %vm101, %v35, 0
    %105 = vmatprep.subr.bf16.mxu0 0
    %106 = vmatpush1.bf16.msra.mxu0 %v103
    %107 = vmatprep.subr.bf16.mxu0 0
    %108 = vmatpush1.bf16.msra.mxu0 0
    %109 = vmatprep.subr.bf16.mxu0 0
    %110 = vmatpush1.bf16.msra.mxu0 0
    %111 = vmatprep.subr.bf16.mxu0 0
    %112 = vmatpush1.bf16.msra.mxu0 0
    %113 = vmatprep.subr.bf16.mxu0 0
    %114 = vmatpush1.bf16.msra.mxu0 0
    %115 = vmatprep.subr.bf16.mxu0 0
    %116 = vmatpush1.bf16.msra.mxu0 0
    %117 = vmatprep.subr.bf16.mxu0 0
    %118 = vmatpush1.bf16.msra.mxu0 0
    %119 = vmatprep.subr.bf16.mxu0 0
    %120 = vmatpush1.bf16.msra.mxu0 0
    %121 = vmatprep.subr.bf16.mxu0 0
    %122 = vmatpush1.bf16.msra.mxu0 0
    %123 = vmatprep.subr.bf16.mxu0 0
    %124 = vmatpush1.bf16.msra.mxu0 0
    %125 = vmatprep.subr.bf16.mxu0 0
    %126 = vmatpush1.bf16.msra.mxu0 0
    %127 = vmatprep.subr.bf16.mxu0 0
    %128 = vmatpush1.bf16.msra.mxu0 0
    %129 = vmatprep.subr.bf16.mxu0 0
    %130 = vmatpush1.bf16.msra.mxu0 0
    %131 = vmatprep.subr.bf16.mxu0 0
    %132 = vmatpush1.bf16.msra.mxu0 0
    %133 = vmatprep.subr.bf16.mxu0 0
    %134 = vmatpush1.bf16.msra.mxu0 0
    %135 = vmatprep.subr.bf16.mxu0 0
    %136 = vmatpush1.bf16.msra.mxu0 0
    %137 = vmatprep.mubr.bf16.mxu0 0
    %138 = vmatmul.mubr.bf16.gmra.mrb[0].mxu0 %v78
    %v139 = vpop.f32.mrb[0].mxu0
    %v140 = vadd.f32 0.0, %v139
    %v141 = vpop.f32.mrb[0].mxu0
    %v142 = vpop.f32.mrb[0].mxu0
    %v143 = vadd.f32 0.0, %v142
    %v144 = vpop.f32.mrb[0].mxu0
    %145 = vmatprep.mubr.bf16.mxu0 0
    %146 = vmatmul.mubr.bf16.gmra.mrb[0].mxu0 %v81
    %v147 = vpop.f32.mrb[0].mxu0
    %v148 = vadd.f32 0.0, %v147
    %v149 = vpop.f32.mrb[0].mxu0
    %v150 = vpop.f32.mrb[0].mxu0
    %v151 = vadd.f32 0.0, %v150
    %v152 = vpop.f32.mrb[0].mxu0
    %153 = vmatprep.mubr.bf16.mxu0 0
    %154 = vmatmul.mubr.bf16.gmra.mrb[0].mxu0 %v84
    %v155 = vpop.f32.mrb[0].mxu0
    %v156 = vadd.f32 0.0, %v155
    %v157 = vpop.f32.mrb[0].mxu0
    %v158 = vpop.f32.mrb[0].mxu0
    %v159 = vadd.f32 0.0, %v158
    %v160 = vpop.f32.mrb[0].mxu0
    %161 = vmatprep.mubr.bf16.mxu0 0
    %162 = vmatmul.mubr.bf16.gmra.mrb[0].mxu0 %v87
    %v163 = vpop.f32.mrb[0].mxu0
    %v164 = vadd.f32 0.0, %v163
    %v165 = vpop.f32.mrb[0].mxu0
    %v166 = vpop.f32.mrb[0].mxu0
    %v167 = vadd.f32 0.0, %v166
    %v168 = vpop.f32.mrb[0].mxu0
    %169 = vmatprep.mubr.bf16.mxu0 0
    %170 = vmatmul.mubr.bf16.gmra.mrb[0].mxu0 %v90
    %v171 = vpop.f32.mrb[0].mxu0
    %v172 = vadd.f32 0.0, %v171
    %v173 = vpop.f32.mrb[0].mxu0
    %v174 = vpop.f32.mrb[0].mxu0
    %v175 = vadd.f32 0.0, %v174
    %v176 = vpop.f32.mrb[0].mxu0
    %177 = vmatprep.mubr.bf16.mxu0 0
    %178 = vmatmul.mubr.bf16.gmra.mrb[0].mxu0 %v93
    %v179 = vpop.f32.mrb[0].mxu0
    %v180 = vadd.f32 0.0, %v179
    %v181 = vpop.f32.mrb[0].mxu0
    %v182 = vpop.f32.mrb[0].mxu0
    %v183 = vadd.f32 0.0, %v182
    %v184 = vpop.f32.mrb[0].mxu0
    %185 = vmatprep.mubr.bf16.mxu0 0
    %186 = vmatmul.mubr.bf16.gmra.mrb[0].mxu0 %v96
    %v187 = vpop.f32.mrb[0].mxu0
    %v188 = vadd.f32 0.0, %v187
    %v189 = vpop.f32.mrb[0].mxu0
    %v190 = vpop.f32.mrb[0].mxu0
    %v191 = vadd.f32 0.0, %v190
    %v192 = vpop.f32.mrb[0].mxu0
    %193 = vmatprep.mubr.bf16.mxu0 0
    %194 = vmatmul.mubr.bf16.gmra.mrb[0].mxu0 %v99
    %v195 = vpop.f32.mrb[0].mxu0
    %v196 = vadd.f32 0.0, %v195
    %v197 = vpop.f32.mrb[0].mxu0
    %v198 = vpop.f32.mrb[0].mxu0
    %v199 = vadd.f32 0.0, %v198
    %v200 = vpop.f32.mrb[0].mxu0
    %201 = vdwg.mxu0
    %v202 = vpack.c.bf16 %v143, %v140
    %v203 = vpack.c.bf16 %v151, %v148
    %v204 = vpack.c.bf16 %v159, %v156
    %v205 = vpack.c.bf16 %v167, %v164
    %v206 = vpack.c.bf16 %v175, %v172
    %v207 = vpack.c.bf16 %v183, %v180
    %v208 = vpack.c.bf16 %v191, %v188
    %v209 = vpack.c.bf16 %v199, %v196
    %v218 = vunpack.c.l.b16 %v202
    %v219 = vunpack.c.h.b16 %v202
    %v220 = vunpack.c.l.b16 %v203
    %v221 = vunpack.c.h.b16 %v203
    %v222 = vunpack.c.l.b16 %v204
    %v223 = vunpack.c.h.b16 %v204
    %v224 = vunpack.c.l.b16 %v205
    %v225 = vunpack.c.h.b16 %v205
    %v226 = vunpack.c.l.b16 %v206
    %v227 = vunpack.c.h.b16 %v206
    %v228 = vunpack.c.l.b16 %v207
    %v229 = vunpack.c.h.b16 %v207
    %v230 = vunpack.c.l.b16 %v208
    %v231 = vunpack.c.h.b16 %v208
    %v232 = vunpack.c.l.b16 %v209
    %v233 = vunpack.c.h.b16 %v209
    %v234 = vpack.c.b16 %v218, %v218
    %v235 = vpack.c.b16 %v219, %v219
    %v236 = vpack.c.b16 %v220, %v220
    %v237 = vpack.c.b16 %v221, %v221
    %v238 = vpack.c.b16 %v222, %v222
    %v239 = vpack.c.b16 %v223, %v223
    %v240 = vpack.c.b16 %v224, %v224
    %v241 = vpack.c.b16 %v225, %v225
    %v242 = vpack.c.b16 %v226, %v226
    %v243 = vpack.c.b16 %v227, %v227
    %v244 = vpack.c.b16 %v228, %v228
    %v245 = vpack.c.b16 %v229, %v229
    %v246 = vpack.c.b16 %v230, %v230
    %v247 = vpack.c.b16 %v231, %v231
    %v248 = vpack.c.b16 %v232, %v232
    %v249 = vpack.c.b16 %v233, %v233
    %266 = vst [vmem:[#allocation2] sm:$0xf] %v234
    %267 = vst [vmem:[#allocation2 + $0x4] sm:$0xf] %v235
    %268 = vst [vmem:[#allocation2 + $0x8] sm:$0xf] %v236
    %269 = vst [vmem:[#allocation2 + $0xc] sm:$0xf] %v237
    %270 = vst [vmem:[#allocation2 + $0x10] sm:$0xf] %v238
    %271 = vst [vmem:[#allocation2 + $0x14] sm:$0xf] %v239
    %272 = vst [vmem:[#allocation2 + $0x18] sm:$0xf] %v240
    %273 = vst [vmem:[#allocation2 + $0x1c] sm:$0xf] %v241
    %274 = vst [vmem:[#allocation2 + $0x20] sm:$0xf] %v242
    %275 = vst [vmem:[#allocation2 + $0x24] sm:$0xf] %v243
    %276 = vst [vmem:[#allocation2 + $0x28] sm:$0xf] %v244
    %277 = vst [vmem:[#allocation2 + $0x2c] sm:$0xf] %v245
    %278 = vst [vmem:[#allocation2 + $0x30] sm:$0xf] %v246
    %279 = vst [vmem:[#allocation2 + $0x34] sm:$0xf] %v247
    %280 = vst [vmem:[#allocation2 + $0x38] sm:$0xf] %v248
    %281 = vst [vmem:[#allocation2 + $0x3c] sm:$0xf] %v249
    %v282 = vld [vmem:[%s2] sm:$0xf]
    %v284 = vsel %vm101, %v282, 0
    %286 = vmatprep.subr.bf16.mxu0 0
    %287 = vmatpush1.bf16.msra.mxu0 %v284
    %288 = vmatprep.subr.bf16.mxu0 0
    %289 = vmatpush1.bf16.msra.mxu0 0
    %290 = vmatprep.subr.bf16.mxu0 0
    %291 = vmatpush1.bf16.msra.mxu0 0
    %292 = vmatprep.subr.bf16.mxu0 0
    %293 = vmatpush1.bf16.msra.mxu0 0
    %294 = vmatprep.subr.bf16.mxu0 0
    %295 = vmatpush1.bf16.msra.mxu0 0
    %296 = vmatprep.subr.bf16.mxu0 0
    %297 = vmatpush1.bf16.msra.mxu0 0
    %298 = vmatprep.subr.bf16.mxu0 0
    %299 = vmatpush1.bf16.msra.mxu0 0
    %300 = vmatprep.subr.bf16.mxu0 0
    %301 = vmatpush1.bf16.msra.mxu0 0
    %302 = vmatprep.subr.bf16.mxu0 0
    %303 = vmatpush1.bf16.msra.mxu0 0
    %304 = vmatprep.subr.bf16.mxu0 0
    %305 = vmatpush1.bf16.msra.mxu0 0
    %306 = vmatprep.subr.bf16.mxu0 0
    %307 = vmatpush1.bf16.msra.mxu0 0
    %308 = vmatprep.subr.bf16.mxu0 0
    %309 = vmatpush1.bf16.msra.mxu0 0
    %310 = vmatprep.subr.bf16.mxu0 0
    %311 = vmatpush1.bf16.msra.mxu0 0
    %312 = vmatprep.subr.bf16.mxu0 0
    %313 = vmatpush1.bf16.msra.mxu0 0
    %314 = vmatprep.subr.bf16.mxu0 0
    %315 = vmatpush1.bf16.msra.mxu0 0
    %316 = vmatprep.subr.bf16.mxu0 0
    %317 = vmatpush1.bf16.msra.mxu0 0
    %318 = vmatprep.mubr.bf16.mxu0 0
    %319 = vmatmul.mubr.bf16.gmra.mrb[0].mxu0 %v78
    %v320 = vpop.f32.mrb[0].mxu0
    %v321 = vadd.f32 0.0, %v320
    %v322 = vpop.f32.mrb[0].mxu0
    %v323 = vpop.f32.mrb[0].mxu0
    %v324 = vadd.f32 0.0, %v323
    %v325 = vpop.f32.mrb[0].mxu0
    %326 = vmatprep.mubr.bf16.mxu0 0
    %327 = vmatmul.mubr.bf16.gmra.mrb[0].mxu0 %v81
    %v328 = vpop.f32.mrb[0].mxu0
    %v329 = vadd.f32 0.0, %v328
    %v330 = vpop.f32.mrb[0].mxu0
    %v331 = vpop.f32.mrb[0].mxu0
    %v332 = vadd.f32 0.0, %v331
    %v333 = vpop.f32.mrb[0].mxu0
    %334 = vmatprep.mubr.bf16.mxu0 0
    %335 = vmatmul.mubr.bf16.gmra.mrb[0].mxu0 %v84
    %v336 = vpop.f32.mrb[0].mxu0
    %v337 = vadd.f32 0.0, %v336
    %v338 = vpop.f32.mrb[0].mxu0
    %v339 = vpop.f32.mrb[0].mxu0
    %v340 = vadd.f32 0.0, %v339
    %v341 = vpop.f32.mrb[0].mxu0
    %342 = vmatprep.mubr.bf16.mxu0 0
    %343 = vmatmul.mubr.bf16.gmra.mrb[0].mxu0 %v87
    %v344 = vpop.f32.mrb[0].mxu0
    %v345 = vadd.f32 0.0, %v344
    %v346 = vpop.f32.mrb[0].mxu0
    %v347 = vpop.f32.mrb[0].mxu0
    %v348 = vadd.f32 0.0, %v347
    %v349 = vpop.f32.mrb[0].mxu0
    %350 = vmatprep.mubr.bf16.mxu0 0
    %351 = vmatmul.mubr.bf16.gmra.mrb[0].mxu0 %v90
    %v352 = vpop.f32.mrb[0].mxu0
    %v353 = vadd.f32 0.0, %v352
    %v354 = vpop.f32.mrb[0].mxu0
    %v355 = vpop.f32.mrb[0].mxu0
    %v356 = vadd.f32 0.0, %v355
    %v357 = vpop.f32.mrb[0].mxu0
    %358 = vmatprep.mubr.bf16.mxu0 0
    %359 = vmatmul.mubr.bf16.gmra.mrb[0].mxu0 %v93
    %v360 = vpop.f32.mrb[0].mxu0
    %v361 = vadd.f32 0.0, %v360
    %v362 = vpop.f32.mrb[0].mxu0
    %v363 = vpop.f32.mrb[0].mxu0
    %v364 = vadd.f32 0.0, %v363
    %v365 = vpop.f32.mrb[0].mxu0
    %366 = vmatprep.mubr.bf16.mxu0 0
    %367 = vmatmul.mubr.bf16.gmra.mrb[0].mxu0 %v96
    %v368 = vpop.f32.mrb[0].mxu0
    %v369 = vadd.f32 0.0, %v368
    %v370 = vpop.f32.mrb[0].mxu0
    %v371 = vpop.f32.mrb[0].mxu0
    %v372 = vadd.f32 0.0, %v371
    %v373 = vpop.f32.mrb[0].mxu0
    %374 = vmatprep.mubr.bf16.mxu0 0
    %375 = vmatmul.mubr.bf16.gmra.mrb[0].mxu0 %v99
    %v376 = vpop.f32.mrb[0].mxu0
    %v377 = vadd.f32 0.0, %v376
    %v378 = vpop.f32.mrb[0].mxu0
    %v379 = vpop.f32.mrb[0].mxu0
    %v380 = vadd.f32 0.0, %v379
    %v381 = vpop.f32.mrb[0].mxu0
    %382 = vdwg.mxu0
    %v383 = vpack.c.bf16 %v324, %v321
    %v384 = vpack.c.bf16 %v332, %v329
    %v385 = vpack.c.bf16 %v340, %v337
    %v386 = vpack.c.bf16 %v348, %v345
    %v387 = vpack.c.bf16 %v356, %v353
    %v388 = vpack.c.bf16 %v364, %v361
    %v389 = vpack.c.bf16 %v372, %v369
    %v390 = vpack.c.bf16 %v380, %v377
    %v399 = vunpack.c.l.b16 %v383
    %v400 = vunpack.c.h.b16 %v383
    %v401 = vunpack.c.l.b16 %v384
    %v402 = vunpack.c.h.b16 %v384
    %v403 = vunpack.c.l.b16 %v385
    %v404 = vunpack.c.h.b16 %v385
    %v405 = vunpack.c.l.b16 %v386
    %v406 = vunpack.c.h.b16 %v386
    %v407 = vunpack.c.l.b16 %v387
    %v408 = vunpack.c.h.b16 %v387
    %v409 = vunpack.c.l.b16 %v388
    %v410 = vunpack.c.h.b16 %v388
    %v411 = vunpack.c.l.b16 %v389
    %v412 = vunpack.c.h.b16 %v389
    %v413 = vunpack.c.l.b16 %v390
    %v414 = vunpack.c.h.b16 %v390
    %v415 = vpack.c.b16 %v399, %v399
    %v416 = vpack.c.b16 %v400, %v400
    %v417 = vpack.c.b16 %v401, %v401
    %v418 = vpack.c.b16 %v402, %v402
    %v419 = vpack.c.b16 %v403, %v403
    %v420 = vpack.c.b16 %v404, %v404
    %v421 = vpack.c.b16 %v405, %v405
    %v422 = vpack.c.b16 %v406, %v406
    %v423 = vpack.c.b16 %v407, %v407
    %v424 = vpack.c.b16 %v408, %v408
    %v425 = vpack.c.b16 %v409, %v409
    %v426 = vpack.c.b16 %v410, %v410
    %v427 = vpack.c.b16 %v411, %v411
    %v428 = vpack.c.b16 %v412, %v412
    %v429 = vpack.c.b16 %v413, %v413
    %v430 = vpack.c.b16 %v414, %v414
    %447 = vst [vmem:[#allocation4] sm:$0xf] %v415
    %448 = vst [vmem:[#allocation4 + $0x4] sm:$0xf] %v416
    %449 = vst [vmem:[#allocation4 + $0x8] sm:$0xf] %v417
    %450 = vst [vmem:[#allocation4 + $0xc] sm:$0xf] %v418
    %451 = vst [vmem:[#allocation4 + $0x10] sm:$0xf] %v419
    %452 = vst [vmem:[#allocation4 + $0x14] sm:$0xf] %v420
    %453 = vst [vmem:[#allocation4 + $0x18] sm:$0xf] %v421
    %454 = vst [vmem:[#allocation4 + $0x1c] sm:$0xf] %v422
    %455 = vst [vmem:[#allocation4 + $0x20] sm:$0xf] %v423
    %456 = vst [vmem:[#allocation4 + $0x24] sm:$0xf] %v424
    %457 = vst [vmem:[#allocation4 + $0x28] sm:$0xf] %v425
    %458 = vst [vmem:[#allocation4 + $0x2c] sm:$0xf] %v426
    %459 = vst [vmem:[#allocation4 + $0x30] sm:$0xf] %v427
    %460 = vst [vmem:[#allocation4 + $0x34] sm:$0xf] %v428
    %461 = vst [vmem:[#allocation4 + $0x38] sm:$0xf] %v429
    %462 = vst [vmem:[#allocation4 + $0x3c] sm:$0xf] %v430
    // Predicated region
    $region14: #{tpu_custom_call.1} parent=1 // pred_check
      _
    $region15: #{tpu_custom_call.1} parent=1 // pred_check_branch
      %464 = sbr.rel (0) target = $region17
    $region16: #{tpu_custom_call.1} parent=1 // pred_region
      %s466 = ssub.s32 1024, 1024
      %467 = vsyncadd [#allocation3], %s466
      %s468 = sshll.u32 [#allocation2], 4
      %s469 = int_to_ptr.vmem [resolvable:$true] %s468
      %474 = dma.vmem_to_hbm [thread:$0]  %s469, 1024, %s3, [#allocation3], 64, 64, 4
    $region17: #{tpu_custom_call.1} parent=1 // pred_fallthru
      _
    // Predicated region
    $region18: #{tpu_custom_call.1} parent=1 // pred_check
      _
    $region19: #{tpu_custom_call.1} parent=1 // pred_check_branch
      %476 = sbr.rel (0) target = $region21
    $region20: #{tpu_custom_call.1} parent=1 // pred_region
      %s478 = ssub.s32 1024, 1024
      %479 = vsyncadd [#allocation5], %s478
      %s480 = sshll.u32 [#allocation4], 4
      %s481 = int_to_ptr.vmem [resolvable:$true] %s480
      %486 = dma.vmem_to_hbm [thread:$0]  %s481, 1024, %s4, [#allocation5], 64, 64, 4
    $region21: #{tpu_custom_call.1} parent=1 // pred_fallthru
      _
    // Predicated region
    $region22: #{tpu_custom_call.1} parent=1 // pred_check
      _
    $region23: #{tpu_custom_call.1} parent=1 // pred_check_branch
      %488 = sbr.rel (0) target = $region25
    $region24: #{tpu_custom_call.1} parent=1 // pred_region
      %489 = dma.done [#allocation3], 1024
    $region25: #{tpu_custom_call.1} parent=1 // pred_fallthru
      _
    // Predicated region
    $region26: #{tpu_custom_call.1} parent=1 // pred_check
      _
    $region27: #{tpu_custom_call.1} parent=1 // pred_check_branch
      %491 = sbr.rel (0) target = $region29
    $region28: #{tpu_custom_call.1} parent=1 // pred_region
      %492 = dma.done [#allocation5], 1024
    $region29: #{tpu_custom_call.1} parent=1 // pred_fallthru
      _
    %493 = vsyncpa [#allocation3], 1
    %494 = vsyncpa [#allocation5], 1

</llo_original>
